<compile_context>
chip_gen: v5e
topology: v5e:2x2
jax: 0.10.0
libtpu: 0.0.40
codegen_flags: <defaults>
</compile_context>

<pallas_src>
import jax
import jax.numpy as jnp
from jax.experimental import pallas as pl
from jax.experimental.pallas import tpu as pltpu

H = 768          # BERT hidden size (hard-coded in the module)
LN_EPS = 1e-5    # nn.LayerNorm default eps
LANES = 128      # lane width for a dense output slab
MAX_TB = 1024    # max batch-tile rows (bf16 tile = 1.5 MiB; 2x buffered ~3 MiB)


def _round_up(x, m):
    return ((x + m - 1) // m) * m


def _head_kernel(x_ref, gamma_ref, beta_ref, w_ref, b_ref, o_ref):
    # x_ref:     [TB, H]       pooled cls embeddings (bf16 or f32)
    # gamma_ref: [1, H]        LayerNorm weight (f32)
    # beta_ref:  [1, H]        LayerNorm bias   (f32)
    # w_ref:     [H, OUT_PAD]  packed classifier weights (bf16, zero-padded)
    # b_ref:     [1, OUT_PAD]  packed classifier biases  (f32, zero-padded)
    # o_ref:     [TB, OUT_PAD] logits slab (bf16, lane-dense), sliced outside
    x = x_ref[...].astype(jnp.float32)

    # Dropout: identity in eval mode (reference module default at inference).
    # TODO(synk): training-mode dropout would need pltpu.prng_* masking.

    # LayerNorm over the hidden axis (f32 math).
    mean = jnp.mean(x, axis=-1, keepdims=True)
    centered = x - mean
    var = jnp.mean(centered * centered, axis=-1, keepdims=True)
    xn = centered * jax.lax.rsqrt(var + LN_EPS)
    y = xn * gamma_ref[...] + beta_ref[...]

    # All L classifiers at once on the MXU: bf16 operands, f32 accumulation.
    logits = jnp.dot(y.astype(jnp.bfloat16), w_ref[...],
                     preferred_element_type=jnp.float32)
    o_ref[...] = (logits + b_ref[...]).astype(o_ref.dtype)


def pack_head_params(ln_gamma, ln_beta, cls_w, cls_b):
    """Pack per-label Linear weights ONCE per model (hoisted out of forward).

    cls_w: [L, 2, H] torch Linear layout [out, in]; cls_b: [L, 2].
    Returns (gamma2d, beta2d, w_cat_bf16, b_cat, L) with lane-dense padding.
    """
    L = cls_w.shape[0]
    out_w = L * 2
    out_pad = _round_up(out_w, LANES)
    #   W_cat[h, l*2 + c] = cls_w[l, c, h]
    w_cat = jnp.transpose(cls_w, (2, 0, 1)).reshape(H, out_w)
    w_cat = jnp.pad(w_cat, ((0, 0), (0, out_pad - out_w))).astype(jnp.bfloat16)
    b_cat = jnp.pad(cls_b.reshape(1, out_w).astype(jnp.float32),
                    ((0, 0), (0, out_pad - out_w)))
    gamma2d = ln_gamma.reshape(1, H).astype(jnp.float32)
    beta2d = ln_beta.reshape(1, H).astype(jnp.float32)
    return gamma2d, beta2d, w_cat, b_cat, L


def _head_call(cls_emb, gamma2d, beta2d, w_cat, b_cat):
    """Fused LayerNorm + packed-classifier kernel. Returns [b_pad, OUT_PAD] bf16."""
    B = cls_emb.shape[0]
    out_pad = w_cat.shape[1]

    # Balanced batch tiles: keep padding < 8 rows per tile, grid >= 2 when the
    # batch is big enough (v7x megacore), tiles capped at MAX_TB rows.
    b8 = _round_up(B, 8)
    num_tiles = max(pl.cdiv(b8, MAX_TB), 2 if b8 >= 16 else 1)
    tb = _round_up(pl.cdiv(b8, num_tiles), 8)
    b_pad = num_tiles * tb

    itemsize = jnp.dtype(cls_emb.dtype).itemsize
    cost = pl.CostEstimate(
        flops=2 * b_pad * H * out_pad + 8 * b_pad * H,
        transcendentals=b_pad,  # one rsqrt per row
        bytes_accessed=(b_pad * H * itemsize          # cls_emb in
                        + H * out_pad * 2             # bf16 weights
                        + (2 * H + out_pad) * 4       # gamma/beta/bias
                        + b_pad * out_pad * 2),       # bf16 logits out
    )

    # Note: cls_emb is NOT padded here. If b_pad > B the last input block is
    # ragged; Pallas clips the DMA and the stale rows are row-local garbage
    # that lands in output rows >= B (sliced off by the caller).
    return pl.pallas_call(
        _head_kernel,
        out_shape=jax.ShapeDtypeStruct((b_pad, out_pad), jnp.bfloat16),
        grid=(num_tiles,),
        in_specs=[
            pl.BlockSpec((tb, H), lambda i: (i, 0)),        # cls_emb tile
            pl.BlockSpec((1, H), lambda i: (0, 0)),         # gamma (resident)
            pl.BlockSpec((1, H), lambda i: (0, 0)),         # beta  (resident)
            pl.BlockSpec((H, out_pad), lambda i: (0, 0)),   # W     (resident)
            pl.BlockSpec((1, out_pad), lambda i: (0, 0)),   # bias  (resident)
        ],
        out_specs=pl.BlockSpec((tb, out_pad), lambda i: (i, 0)),
        compiler_params=pltpu.CompilerParams(
            dimension_semantics=("parallel",)),
        cost_estimate=cost,
    )(cls_emb, gamma2d, beta2d, w_cat, b_cat)


def make_property_v2_head(ln_gamma, ln_beta, cls_w, cls_b):
    """Pack the head parameters once and return a jitted forward(cls_emb)."""
    gamma2d, beta2d, w_cat, b_cat, L = pack_head_params(
        ln_gamma, ln_beta, cls_w, cls_b)

    @jax.jit
    def forward(cls_emb):
        B = cls_emb.shape[0]
        out = _head_call(cls_emb, gamma2d, beta2d, w_cat, b_cat)
        logits = out[:B, :L * 2].astype(jnp.float32)
        # torch: stack -> [L, B, 2], view(-1, 2) -> [L*B, 2] (label-major).
        return logits.reshape(B, L, 2).transpose(1, 0, 2).reshape(L * B, 2)

    return forward


def pt_model_for_property_v2_head(cls_emb, ln_gamma, ln_beta, cls_w, cls_b):
    """Convenience one-shot wrapper (packs per call; prefer make_property_v2_head)."""
    return make_property_v2_head(ln_gamma, ln_beta, cls_w, cls_b)(cls_emb)


def _reference(cls_emb, ln_gamma, ln_beta, cls_w, cls_b):
    x = cls_emb.astype(jnp.float32)
    mean = jnp.mean(x, axis=-1, keepdims=True)
    var = jnp.mean((x - mean) ** 2, axis=-1, keepdims=True)
    y = (x - mean) / jnp.sqrt(var + LN_EPS) * ln_gamma + ln_beta
    logits = jnp.einsum("bh,lch->lbc", y, cls_w) + cls_b[:, None, :]
    return logits.reshape(-1, 2)


if __name__ == "__main__":
    B = 8          # batch
    L = 8          # prop_label (number of binary classifiers)

    key = jax.random.PRNGKey(0)
    k_x, k_g, k_b, k_w, k_wb = jax.random.split(key, 5)

    # The BERT trunk typically produces bf16 activations; feed bf16 directly.
    cls_emb = jax.random.normal(k_x, (B, H), dtype=jnp.float32).astype(jnp.bfloat16)
    ln_gamma = 1.0 + 0.01 * jax.random.normal(k_g, (H,), dtype=jnp.float32)
    ln_beta = 0.01 * jax.random.normal(k_b, (H,), dtype=jnp.float32)
    cls_w = 0.02 * jax.random.normal(k_w, (L, 2, H), dtype=jnp.float32)
    cls_b = 0.02 * jax.random.normal(k_wb, (L, 2), dtype=jnp.float32)

    head = make_property_v2_head(ln_gamma, ln_beta, cls_w, cls_b)  # packed once
    logits = head(cls_emb)
    jax.block_until_ready(logits)

    ref = _reference(cls_emb, ln_gamma, ln_beta, cls_w, cls_b)
    assert logits.shape == (L * B, 2), logits.shape
    # bf16 matmul operands + bf16 output slab, f32 accumulation -> loosened tol.
    assert jnp.allclose(logits, ref, atol=3e-2, rtol=3e-2), float(
        jnp.max(jnp.abs(logits - ref))
    )
    print("KERNEL_OK")
</pallas_src>

<mosaic_0001>
module attributes {stable_mosaic.version = 11 : i64} {
  func.func @_head_kernel(%arg0: i32, %arg1: memref<8x768xbf16, #tpu.memory_space<vmem>>, %arg2: memref<1x768xf32, #tpu.memory_space<vmem>>, %arg3: memref<1x768xf32, #tpu.memory_space<vmem>>, %arg4: memref<768x128xbf16, #tpu.memory_space<vmem>>, %arg5: memref<1x128xf32, #tpu.memory_space<vmem>>, %arg6: memref<8x128xbf16, #tpu.memory_space<vmem>>) attributes {dimension_semantics = [#tpu.dimension_semantics<parallel>], iteration_bounds = array<i64: 1>, scalar_prefetch = 0 : i64, scratch_operands = 0 : i64, tpu.core_type = #tpu.core_type<tc>, window_params = [{transform_indices = @transform_0, window_bounds = array<i64: 8, 768>}, {pipeline_mode = #tpu.pipeline_mode<synchronous>, transform_indices = @transform_1, window_bounds = array<i64: 1, 768>}, {pipeline_mode = #tpu.pipeline_mode<synchronous>, transform_indices = @transform_2, window_bounds = array<i64: 1, 768>}, {pipeline_mode = #tpu.pipeline_mode<synchronous>, transform_indices = @transform_3, window_bounds = array<i64: 768, 128>}, {pipeline_mode = #tpu.pipeline_mode<synchronous>, transform_indices = @transform_4, window_bounds = array<i64: 1, 128>}, {transform_indices = @transform_5, window_bounds = array<i64: 8, 128>}]} {
    %c0 = arith.constant 0 : index
    %c0_0 = arith.constant 0 : index
    %0 = vector.load %arg1[%c0, %c0_0] : memref<8x768xbf16, #tpu.memory_space<vmem>>, vector<8x768xbf16>
    %1 = arith.extf %0 : vector<8x768xbf16> to vector<8x768xf32>
    %cst = arith.constant dense<0.000000e+00> : vector<8xf32>
    %2 = vector.multi_reduction <add>, %1, %cst [1] : vector<8x768xf32> to vector<8xf32>
    %3 = vector.shape_cast %2 : vector<8xf32> to vector<8x1xf32>
    %cst_1 = arith.constant 7.680000e+02 : f32
    %4 = vector.broadcast %cst_1 : f32 to vector<8x1xf32>
    %5 = arith.divf %3, %4 : vector<8x1xf32>
    %6 = vector.broadcast %5 : vector<8x1xf32> to vector<8x768xf32>
    %7 = arith.subf %1, %6 : vector<8x768xf32>
    %8 = arith.mulf %7, %7 : vector<8x768xf32>
    %cst_2 = arith.constant dense<0.000000e+00> : vector<8xf32>
    %9 = vector.multi_reduction <add>, %8, %cst_2 [1] : vector<8x768xf32> to vector<8xf32>
    %10 = vector.shape_cast %9 : vector<8xf32> to vector<8x1xf32>
    %cst_3 = arith.constant 7.680000e+02 : f32
    %11 = vector.broadcast %cst_3 : f32 to vector<8x1xf32>
    %12 = arith.divf %10, %11 : vector<8x1xf32>
    %cst_4 = arith.constant 9.99999974E-6 : f32
    %13 = vector.broadcast %cst_4 : f32 to vector<8x1xf32>
    %14 = arith.addf %12, %13 : vector<8x1xf32>
    %15 = math.rsqrt %14 : vector<8x1xf32>
    %16 = vector.broadcast %15 : vector<8x1xf32> to vector<8x768xf32>
    %17 = arith.mulf %7, %16 : vector<8x768xf32>
    %c0_5 = arith.constant 0 : index
    %c0_6 = arith.constant 0 : index
    %18 = vector.load %arg2[%c0_5, %c0_6] : memref<1x768xf32, #tpu.memory_space<vmem>>, vector<1x768xf32>
    %19 = vector.broadcast %18 : vector<1x768xf32> to vector<8x768xf32>
    %20 = arith.mulf %17, %19 : vector<8x768xf32>
    %c0_7 = arith.constant 0 : index
    %c0_8 = arith.constant 0 : index
    %21 = vector.load %arg3[%c0_7, %c0_8] : memref<1x768xf32, #tpu.memory_space<vmem>>, vector<1x768xf32>
    %22 = vector.broadcast %21 : vector<1x768xf32> to vector<8x768xf32>
    %23 = arith.addf %20, %22 : vector<8x768xf32>
    %24 = arith.truncf %23 : vector<8x768xf32> to vector<8x768xbf16>
    %c0_9 = arith.constant 0 : index
    %c0_10 = arith.constant 0 : index
    %25 = vector.load %arg4[%c0_9, %c0_10] : memref<768x128xbf16, #tpu.memory_space<vmem>>, vector<768x128xbf16>
    %cst_11 = arith.constant dense<0.000000e+00> : vector<8x128xf32>
    %26 = tpu.matmul %24, %25, %cst_11 {dimension_numbers = #tpu.dot_dimension_numbers<[1], [0], [0], [1], [0, 0, 1, 1], [], []>} : vector<8x768xbf16>, vector<768x128xbf16>, vector<8x128xf32> -> vector<8x128xf32>
    %c0_12 = arith.constant 0 : index
    %c0_13 = arith.constant 0 : index
    %27 = vector.load %arg5[%c0_12, %c0_13] : memref<1x128xf32, #tpu.memory_space<vmem>>, vector<1x128xf32>
    %28 = vector.broadcast %27 : vector<1x128xf32> to vector<8x128xf32>
    %29 = arith.addf %26, %28 : vector<8x128xf32>
    %30 = arith.truncf %29 : vector<8x128xf32> to vector<8x128xbf16>
    %c0_14 = arith.constant 0 : index
    %c0_15 = arith.constant 0 : index
    %31 = vector.load %arg6[%c0_14, %c0_15] : memref<8x128xbf16, #tpu.memory_space<vmem>>, vector<8x128xbf16>
    tpu.vector_store %arg6[%c0_14, %c0_15], %30 {strides = array<i32>} : memref<8x128xbf16, #tpu.memory_space<vmem>>, vector<8x128xbf16>,
    return
  }
  func.func @transform_0(%arg0: i32) -> (i32, i32) {
    %c0_i32 = arith.constant 0 : i32
    %c0_i32_0 = arith.constant 0 : i32
    return %arg0, %c0_i32 : i32, i32
  }
  func.func @transform_1(%arg0: i32) -> (i32, i32) {
    %c0_i32 = arith.constant 0 : i32
    %c0_i32_0 = arith.constant 0 : i32
    %c0_i32_1 = arith.constant 0 : i32
    return %c0_i32, %c0_i32_0 : i32, i32
  }
  func.func @transform_2(%arg0: i32) -> (i32, i32) {
    %c0_i32 = arith.constant 0 : i32
    %c0_i32_0 = arith.constant 0 : i32
    %c0_i32_1 = arith.constant 0 : i32
    return %c0_i32, %c0_i32_0 : i32, i32
  }
  func.func @transform_3(%arg0: i32) -> (i32, i32) {
    %c0_i32 = arith.constant 0 : i32
    %c0_i32_0 = arith.constant 0 : i32
    %c0_i32_1 = arith.constant 0 : i32
    return %c0_i32, %c0_i32_0 : i32, i32
  }
  func.func @transform_4(%arg0: i32) -> (i32, i32) {
    %c0_i32 = arith.constant 0 : i32
    %c0_i32_0 = arith.constant 0 : i32
    %c0_i32_1 = arith.constant 0 : i32
    return %c0_i32, %c0_i32_0 : i32, i32
  }
  func.func @transform_5(%arg0: i32) -> (i32, i32) {
    %c0_i32 = arith.constant 0 : i32
    %c0_i32_0 = arith.constant 0 : i32
    return %arg0, %c0_i32 : i32, i32
  }
}

</mosaic_0001>

<llo_original>
// kernel: forward.1
$region0: #{forward.1}
  #allocation0 [shape = 'u32[]', space=smem, size = 0x4, offset = 0x4, fixed_abs, tag = 'smem constant byte address 0x4 - core index']
  #allocation1 [shape = 'u32[72,128]{1,0:T(1,128)}', space=vmem, size = 0x9000, scoped, tag = 'internal scratch']
  %s0 = inlined_call_operand.hbm [shape: bf16[8,768], index: 0, kind: input, shape index: {}]
  %s1 = inlined_call_operand.hbm [shape: f32[1,768], index: 1, kind: input, shape index: {}]
  %s2 = inlined_call_operand.hbm [shape: f32[1,768], index: 2, kind: input, shape index: {}]
  %s3 = inlined_call_operand.hbm [shape: bf16[768,128], index: 3, kind: input, shape index: {}]
  %s4 = inlined_call_operand.vmem [shape: f32[1,128], index: 4, kind: input, shape index: {}]
  %s5 = inlined_call_operand.vmem [shape: bf16[8,128], index: 5, kind: output, shape index: {}]
  %s6 = sld [smem:[#allocation0]]
  $region46: #{forward.1} parent=0
    _
  %s8 = ssub.s32 1, %s6
  %s9 = scalar_select 0, %s8, %s6
  $region1: #{forward.1} parent=0
    #allocation2 [shape = 'u8[12288]{0}', space=vmem, size = 0x3000, scoped, tag = 'input window, operand 0, single buffered']
    #allocation3 [shape = 's32[1]{0}', space=sflag, size = 0x4, scoped, tag = 'scoped memory for forward.1']
    #allocation4 [shape = 'u8[3072]{0}', space=vmem, size = 0xc00, scoped, tag = 'input window, operand 1, single buffered']
    #allocation5 [shape = 's32[1]{0}', space=sflag, size = 0x4, scoped, tag = 'scoped memory for forward.1']
    #allocation6 [shape = 'u8[3072]{0}', space=vmem, size = 0xc00, scoped, tag = 'input window, operand 2, single buffered']
    #allocation7 [shape = 'u8[196608]{0}', space=vmem, size = 0x30000, scoped, tag = 'input window, operand 3, single buffered']
    #allocation8 [shape = 's32[1]{0}', space=sflag, size = 0x4, scoped, tag = 'scoped memory for forward.1']
    %10 = vsyncpa [#allocation3], 0
    %11 = vsyncpa [#allocation5], 0
    %12 = vsyncpa [#allocation8], 0
    // Predicated region
    $region2: #{forward.1} parent=1 // pred_check
      _
    $region3: #{forward.1} parent=1 // pred_check_branch
      %14 = sbr.rel (0) target = $region5
    $region4: #{forward.1} parent=1 // pred_region
      %16 = vsyncadd [#allocation3], 0
      %s18 = sshll.u32 %s0, 4
      %s19 = int_to_ptr.hbm [resolvable:$true] %s18
      %s20 = sshll.u32 [#allocation2], 4
      %s21 = int_to_ptr.vmem [resolvable:$true] %s20
      %23 = dma.hbm_to_vmem [thread:$0]  %s19, 384, %s21, [#allocation3]
    $region5: #{forward.1} parent=1 // pred_fallthru
      _
    // Predicated region
    $region6: #{forward.1} parent=1 // pred_check
      _
    $region7: #{forward.1} parent=1 // pred_check_branch
      %25 = sbr.rel (0) target = $region9
    $region8: #{forward.1} parent=1 // pred_region
      %27 = vsyncadd [#allocation5], 0
      %s29 = sshll.u32 %s1, 4
      %s30 = int_to_ptr.hbm [resolvable:$true] %s29
      %s31 = sshll.u32 [#allocation4], 4
      %s32 = int_to_ptr.vmem [resolvable:$true] %s31
      %34 = dma.hbm_to_vmem [thread:$0]  %s30, 96, %s32, [#allocation5]
    $region9: #{forward.1} parent=1 // pred_fallthru
      _
    // Predicated region
    $region10: #{forward.1} parent=1 // pred_check
      _
    $region11: #{forward.1} parent=1 // pred_check_branch
      %36 = sbr.rel (0) target = $region13
    $region12: #{forward.1} parent=1 // pred_region
      %38 = vsyncadd [#allocation5], 0
      %s40 = sshll.u32 %s2, 4
      %s41 = int_to_ptr.hbm [resolvable:$true] %s40
      %s42 = sshll.u32 [#allocation6], 4
      %s43 = int_to_ptr.vmem [resolvable:$true] %s42
      %45 = dma.hbm_to_vmem [thread:$0]  %s41, 96, %s43, [#allocation5]
    $region13: #{forward.1} parent=1 // pred_fallthru
      _
    // Predicated region
    $region14: #{forward.1} parent=1 // pred_check
      _
    $region15: #{forward.1} parent=1 // pred_check_branch
      %47 = sbr.rel (0) target = $region17
    $region16: #{forward.1} parent=1 // pred_region
      %49 = vsyncadd [#allocation8], 0
      %s50 = sshll.u32 %s3, 4
      %s51 = int_to_ptr.hbm [resolvable:$true] %s50
      %s52 = sshll.u32 [#allocation7], 4
      %s53 = int_to_ptr.vmem [resolvable:$true] %s52
      %58 = dma.hbm_to_vmem [thread:$0]  %s51, 6144, %s53, [#allocation8], 64, 64, 4
    $region17: #{forward.1} parent=1 // pred_fallthru
      _
    // Predicated region
    $region18: #{forward.1} parent=1 // pred_check
      _
    $region19: #{forward.1} parent=1 // pred_check_branch
      %60 = sbr.rel (0) target = $region21
    $region20: #{forward.1} parent=1 // pred_region
      _
    $region21: #{forward.1} parent=1 // pred_fallthru
      _
    // Predicated region
    $region22: #{forward.1} parent=1 // pred_check
      _
    $region23: #{forward.1} parent=1 // pred_check_branch
      %62 = sbr.rel (0) target = $region25
    $region24: #{forward.1} parent=1 // pred_region
      %64 = dma.done [#allocation3], 384
    $region25: #{forward.1} parent=1 // pred_fallthru
      _
    // Predicated region
    $region26: #{forward.1} parent=1 // pred_check
      _
    $region27: #{forward.1} parent=1 // pred_check_branch
      %66 = sbr.rel (0) target = $region29
    $region28: #{forward.1} parent=1 // pred_region
      %68 = dma.done [#allocation5], 96
    $region29: #{forward.1} parent=1 // pred_fallthru
      _
    // Predicated region
    $region30: #{forward.1} parent=1 // pred_check
      _
    $region31: #{forward.1} parent=1 // pred_check_branch
      %70 = sbr.rel (0) target = $region33
    $region32: #{forward.1} parent=1 // pred_region
      %72 = dma.done [#allocation5], 96
    $region33: #{forward.1} parent=1 // pred_fallthru
      _
    // Predicated region
    $region34: #{forward.1} parent=1 // pred_check
      _
    $region35: #{forward.1} parent=1 // pred_check_branch
      %74 = sbr.rel (0) target = $region37
    $region36: #{forward.1} parent=1 // pred_region
      %76 = dma.done [#allocation8], 6144
    $region37: #{forward.1} parent=1 // pred_fallthru
      _
    %v77 = vld [vmem:[#allocation2] sm:$0xff]
    %v78 = vld [vmem:[#allocation2 + $0x8] sm:$0xff]
    %v79 = vld [vmem:[#allocation2 + $0x10] sm:$0xff]
    %v80 = vunpack.c.l.bf16 %v77
    %v81 = vunpack.c.h.bf16 %v77
    %v82 = vunpack.c.l.bf16 %v78
    %v83 = vunpack.c.h.bf16 %v78
    %v84 = vunpack.c.l.bf16 %v79
    %v85 = vunpack.c.h.bf16 %v79
    %v86 = vadd.f32 %v80, %v81
    %v87 = vadd.f32 %v86, %v82
    %v88 = vadd.f32 %v87, %v83
    %v89 = vadd.f32 %v88, %v84
    %v90 = vadd.f32 %v89, %v85
    %91 = vadd.xlane.f32.xlu0 %v90
    %v92 = vpop.xlane.xlu0 %91
    %v93 = vrcp.pop 768.0
    %v94 = vmul.f32 768.0, %v93
    %v95 = vsub.f32 1.0, %v94
    %v96 = vmul.f32 %v93, %v95
    %v97 = vadd.f32 %v93, %v96
    %vm98 = vweird.f32 %v93
    %v99 = vsel %vm98, %v93, %v97
    %v100 = vmul.f32 %v92, %v99
    %v101 = vsub.f32 %v80, %v100
    %v102 = vsub.f32 %v81, %v100
    %v103 = vsub.f32 %v82, %v100
    %v104 = vsub.f32 %v83, %v100
    %v105 = vsub.f32 %v84, %v100
    %v106 = vsub.f32 %v85, %v100
    %v107 = vmul.f32 %v101, %v101
    %v108 = vmul.f32 %v102, %v102
    %v109 = vmul.f32 %v103, %v103
    %v110 = vmul.f32 %v104, %v104
    %v111 = vmul.f32 %v105, %v105
    %v112 = vmul.f32 %v106, %v106
    %v113 = vadd.f32 %v107, %v108
    %v114 = vadd.f32 %v113, %v109
    %v115 = vadd.f32 %v114, %v110
    %v116 = vadd.f32 %v115, %v111
    %v117 = vadd.f32 %v116, %v112
    %118 = vadd.xlane.f32.xlu0 %v117
    %v119 = vpop.xlane.xlu0 %118
    %v120 = vmul.f32 %v119, %v99
    %v121 = vadd.f32 %v120, 1e-05
    %v122 = vrsqrt.pop %v121
    %v123 = vmul.f32 %v122, %v121
    %v124 = vmul.f32 %v123, %v122
    %v125 = vmul.f32 0.5, %v124
    %v126 = vsub.f32 1.5, %v125
    %v127 = vmul.f32 %v122, %v126
    %vm128 = vweird.f32 %v121
    %vm129 = vweird.f32 %v122
    %vm130 = vmor %vm128, %vm129
    %v131 = vsel %vm130, %v122, %v127
    %v132 = vmul.f32 %v101, %v131
    %v133 = vmul.f32 %v102, %v131
    %v134 = vmul.f32 %v103, %v131
    %v135 = vmul.f32 %v104, %v131
    %v136 = vmul.f32 %v105, %v131
    %v137 = vmul.f32 %v106, %v131
    %v138 = vld [vmem:[#allocation4] sm:$0x3f]
    %v140 = vperm.slane %v138, 0
    %v141 = vperm.slane %v138, 1
    %v142 = vperm.slane %v138, 2
    %v143 = vperm.slane %v138, 3
    %v144 = vperm.slane %v138, 4
    %v145 = vperm.slane %v138, 5
    %v152 = vmul.f32 %v132, %v140
    %v153 = vmul.f32 %v133, %v141
    %v154 = vmul.f32 %v134, %v142
    %v155 = vmul.f32 %v135, %v143
    %v156 = vmul.f32 %v136, %v144
    %v157 = vmul.f32 %v137, %v145
    %v158 = vld [vmem:[#allocation6] sm:$0x3f]
    %v160 = vperm.slane %v158, 0
    %v161 = vperm.slane %v158, 1
    %v162 = vperm.slane %v158, 2
    %v163 = vperm.slane %v158, 3
    %v164 = vperm.slane %v158, 4
    %v165 = vperm.slane %v158, 5
    %v172 = vadd.f32 %v152, %v160
    %v173 = vadd.f32 %v153, %v161
    %v174 = vadd.f32 %v154, %v162
    %v175 = vadd.f32 %v155, %v163
    %v176 = vadd.f32 %v156, %v164
    %v177 = vadd.f32 %v157, %v165
    %v178 = vpack.c.bf16 %v172, %v172
    %v179 = vpack.c.bf16 %v173, %v173
    %v180 = vpack.c.bf16 %v174, %v174
    %v181 = vpack.c.bf16 %v175, %v175
    %v182 = vpack.c.bf16 %v176, %v176
    %v183 = vpack.c.bf16 %v177, %v177
    %v184 = vld [vmem:[#allocation7] sm:$0xf]
    %v185 = vld [vmem:[#allocation7 + $0x4] sm:$0xf]
    %v186 = vld [vmem:[#allocation7 + $0x8] sm:$0xf]
    %v187 = vld [vmem:[#allocation7 + $0xc] sm:$0xf]
    %v188 = vld [vmem:[#allocation7 + $0x10] sm:$0xf]
    %v189 = vld [vmem:[#allocation7 + $0x14] sm:$0xf]
    %v190 = vld [vmem:[#allocation7 + $0x18] sm:$0xf]
    %v191 = vld [vmem:[#allocation7 + $0x1c] sm:$0xf]
    %v192 = vld [vmem:[#allocation7 + $0x20] sm:$0xf]
    %v193 = vld [vmem:[#allocation7 + $0x24] sm:$0xf]
    %v194 = vld [vmem:[#allocation7 + $0x28] sm:$0xf]
    %v195 = vld [vmem:[#allocation7 + $0x2c] sm:$0xf]
    %v196 = vld [vmem:[#allocation7 + $0x30] sm:$0xf]
    %v197 = vld [vmem:[#allocation7 + $0x34] sm:$0xf]
    %v198 = vld [vmem:[#allocation7 + $0x38] sm:$0xf]
    %v199 = vld [vmem:[#allocation7 + $0x3c] sm:$0xf]
    %v200 = vld [vmem:[#allocation7 + $0x40] sm:$0xf]
    %v201 = vld [vmem:[#allocation7 + $0x44] sm:$0xf]
    %v202 = vld [vmem:[#allocation7 + $0x48] sm:$0xf]
    %v203 = vld [vmem:[#allocation7 + $0x4c] sm:$0xf]
    %v204 = vld [vmem:[#allocation7 + $0x50] sm:$0xf]
    %v205 = vld [vmem:[#allocation7 + $0x54] sm:$0xf]
    %v206 = vld [vmem:[#allocation7 + $0x58] sm:$0xf]
    %v207 = vld [vmem:[#allocation7 + $0x5c] sm:$0xf]
    %v208 = vld [vmem:[#allocation7 + $0x60] sm:$0xf]
    %v209 = vld [vmem:[#allocation7 + $0x64] sm:$0xf]
    %v210 = vld [vmem:[#allocation7 + $0x68] sm:$0xf]
    %v211 = vld [vmem:[#allocation7 + $0x6c] sm:$0xf]
    %v212 = vld [vmem:[#allocation7 + $0x70] sm:$0xf]
    %v213 = vld [vmem:[#allocation7 + $0x74] sm:$0xf]
    %v214 = vld [vmem:[#allocation7 + $0x78] sm:$0xf]
    %v215 = vld [vmem:[#allocation7 + $0x7c] sm:$0xf]
    %v216 = vld [vmem:[#allocation7 + $0x80] sm:$0xf]
    %v217 = vld [vmem:[#allocation7 + $0x84] sm:$0xf]
    %v218 = vld [vmem:[#allocation7 + $0x88] sm:$0xf]
    %v219 = vld [vmem:[#allocation7 + $0x8c] sm:$0xf]
    %v220 = vld [vmem:[#allocation7 + $0x90] sm:$0xf]
    %v221 = vld [vmem:[#allocation7 + $0x94] sm:$0xf]
    %v222 = vld [vmem:[#allocation7 + $0x98] sm:$0xf]
    %v223 = vld [vmem:[#allocation7 + $0x9c] sm:$0xf]
    %v224 = vld [vmem:[#allocation7 + $0xa0] sm:$0xf]
    %v225 = vld [vmem:[#allocation7 + $0xa4] sm:$0xf]
    %v226 = vld [vmem:[#allocation7 + $0xa8] sm:$0xf]
    %v227 = vld [vmem:[#allocation7 + $0xac] sm:$0xf]
    %v228 = vld [vmem:[#allocation7 + $0xb0] sm:$0xf]
    %v229 = vld [vmem:[#allocation7 + $0xb4] sm:$0xf]
    %v230 = vld [vmem:[#allocation7 + $0xb8] sm:$0xf]
    %v231 = vld [vmem:[#allocation7 + $0xbc] sm:$0xf]
    %v232 = vld [vmem:[#allocation7 + $0xc0] sm:$0xf]
    %v233 = vld [vmem:[#allocation7 + $0xc4] sm:$0xf]
    %v234 = vld [vmem:[#allocation7 + $0xc8] sm:$0xf]
    %v235 = vld [vmem:[#allocation7 + $0xcc] sm:$0xf]
    %v236 = vld [vmem:[#allocation7 + $0xd0] sm:$0xf]
    %v237 = vld [vmem:[#allocation7 + $0xd4] sm:$0xf]
    %v238 = vld [vmem:[#allocation7 + $0xd8] sm:$0xf]
    %v239 = vld [vmem:[#allocation7 + $0xdc] sm:$0xf]
    %v240 = vld [vmem:[#allocation7 + $0xe0] sm:$0xf]
    %v241 = vld [vmem:[#allocation7 + $0xe4] sm:$0xf]
    %v242 = vld [vmem:[#allocation7 + $0xe8] sm:$0xf]
    %v243 = vld [vmem:[#allocation7 + $0xec] sm:$0xf]
    %v244 = vld [vmem:[#allocation7 + $0xf0] sm:$0xf]
    %v245 = vld [vmem:[#allocation7 + $0xf4] sm:$0xf]
    %v246 = vld [vmem:[#allocation7 + $0xf8] sm:$0xf]
    %v247 = vld [vmem:[#allocation7 + $0xfc] sm:$0xf]
    %v248 = vld [vmem:[#allocation7 + $0x100] sm:$0xf]
    %v249 = vld [vmem:[#allocation7 + $0x104] sm:$0xf]
    %v250 = vld [vmem:[#allocation7 + $0x108] sm:$0xf]
    %v251 = vld [vmem:[#allocation7 + $0x10c] sm:$0xf]
    %v252 = vld [vmem:[#allocation7 + $0x110] sm:$0xf]
    %v253 = vld [vmem:[#allocation7 + $0x114] sm:$0xf]
    %v254 = vld [vmem:[#allocation7 + $0x118] sm:$0xf]
    %v255 = vld [vmem:[#allocation7 + $0x11c] sm:$0xf]
    %v256 = vld [vmem:[#allocation7 + $0x120] sm:$0xf]
    %v257 = vld [vmem:[#allocation7 + $0x124] sm:$0xf]
    %v258 = vld [vmem:[#allocation7 + $0x128] sm:$0xf]
    %v259 = vld [vmem:[#allocation7 + $0x12c] sm:$0xf]
    %v260 = vld [vmem:[#allocation7 + $0x130] sm:$0xf]
    %v261 = vld [vmem:[#allocation7 + $0x134] sm:$0xf]
    %v262 = vld [vmem:[#allocation7 + $0x138] sm:$0xf]
    %v263 = vld [vmem:[#allocation7 + $0x13c] sm:$0xf]
    %v264 = vld [vmem:[#allocation7 + $0x140] sm:$0xf]
    %v265 = vld [vmem:[#allocation7 + $0x144] sm:$0xf]
    %v266 = vld [vmem:[#allocation7 + $0x148] sm:$0xf]
    %v267 = vld [vmem:[#allocation7 + $0x14c] sm:$0xf]
    %v268 = vld [vmem:[#allocation7 + $0x150] sm:$0xf]
    %v269 = vld [vmem:[#allocation7 + $0x154] sm:$0xf]
    %v270 = vld [vmem:[#allocation7 + $0x158] sm:$0xf]
    %v271 = vld [vmem:[#allocation7 + $0x15c] sm:$0xf]
    %v272 = vld [vmem:[#allocation7 + $0x160] sm:$0xf]
    %v273 = vld [vmem:[#allocation7 + $0x164] sm:$0xf]
    %v274 = vld [vmem:[#allocation7 + $0x168] sm:$0xf]
    %v275 = vld [vmem:[#allocation7 + $0x16c] sm:$0xf]
    %v276 = vld [vmem:[#allocation7 + $0x170] sm:$0xf]
    %v277 = vld [vmem:[#allocation7 + $0x174] sm:$0xf]
    %v278 = vld [vmem:[#allocation7 + $0x178] sm:$0xf]
    %v279 = vld [vmem:[#allocation7 + $0x17c] sm:$0xf]
    %v280 = vld [vmem:[%s4] sm:$0x1]
    %v282 = vperm.slane %v280, 0
    %v380 = vunpack.c.l.b16 %v184
    %v381 = vunpack.c.l.b16 %v185
    %v382 = vunpack.c.l.b16 %v186
    %v383 = vunpack.c.l.b16 %v187
    %v384 = vunpack.c.l.b16 %v188
    %v385 = vunpack.c.l.b16 %v189
    %v386 = vunpack.c.l.b16 %v190
    %v387 = vunpack.c.l.b16 %v191
    %v388 = vunpack.c.l.b16 %v192
    %v389 = vunpack.c.l.b16 %v193
    %v390 = vunpack.c.l.b16 %v194
    %v391 = vunpack.c.l.b16 %v195
    %v392 = vunpack.c.l.b16 %v196
    %v393 = vunpack.c.l.b16 %v197
    %v394 = vunpack.c.l.b16 %v198
    %v395 = vunpack.c.l.b16 %v199
    %v396 = vunpack.c.l.b16 %v200
    %v397 = vunpack.c.l.b16 %v201
    %v398 = vunpack.c.l.b16 %v202
    %v399 = vunpack.c.l.b16 %v203
    %v400 = vunpack.c.l.b16 %v204
    %v401 = vunpack.c.l.b16 %v205
    %v402 = vunpack.c.l.b16 %v206
    %v403 = vunpack.c.l.b16 %v207
    %v404 = vunpack.c.l.b16 %v208
    %v405 = vunpack.c.l.b16 %v209
    %v406 = vunpack.c.l.b16 %v210
    %v407 = vunpack.c.l.b16 %v211
    %v408 = vunpack.c.l.b16 %v212
    %v409 = vunpack.c.l.b16 %v213
    %v410 = vunpack.c.l.b16 %v214
    %v411 = vunpack.c.l.b16 %v215
    %v412 = vunpack.c.l.b16 %v216
    %v413 = vunpack.c.l.b16 %v217
    %v414 = vunpack.c.l.b16 %v218
    %v415 = vunpack.c.l.b16 %v219
    %v416 = vunpack.c.l.b16 %v220
    %v417 = vunpack.c.l.b16 %v221
    %v418 = vunpack.c.l.b16 %v222
    %v419 = vunpack.c.l.b16 %v223
    %v420 = vunpack.c.l.b16 %v224
    %v421 = vunpack.c.l.b16 %v225
    %v422 = vunpack.c.l.b16 %v226
    %v423 = vunpack.c.l.b16 %v227
    %v424 = vunpack.c.l.b16 %v228
    %v425 = vunpack.c.l.b16 %v229
    %v426 = vunpack.c.l.b16 %v230
    %v427 = vunpack.c.l.b16 %v231
    %v428 = vunpack.c.l.b16 %v232
    %v429 = vunpack.c.l.b16 %v233
    %v430 = vunpack.c.l.b16 %v234
    %v431 = vunpack.c.l.b16 %v235
    %v432 = vunpack.c.l.b16 %v236
    %v433 = vunpack.c.l.b16 %v237
    %v434 = vunpack.c.l.b16 %v238
    %v435 = vunpack.c.l.b16 %v239
    %v436 = vunpack.c.l.b16 %v240
    %v437 = vunpack.c.l.b16 %v241
    %v438 = vunpack.c.l.b16 %v242
    %v439 = vunpack.c.l.b16 %v243
    %v440 = vunpack.c.l.b16 %v244
    %v441 = vunpack.c.l.b16 %v245
    %v442 = vunpack.c.l.b16 %v246
    %v443 = vunpack.c.l.b16 %v247
    %v444 = vunpack.c.l.b16 %v248
    %v445 = vunpack.c.l.b16 %v249
    %v446 = vunpack.c.l.b16 %v250
    %v447 = vunpack.c.l.b16 %v251
    %v448 = vunpack.c.l.b16 %v252
    %v449 = vunpack.c.l.b16 %v253
    %v450 = vunpack.c.l.b16 %v254
    %v451 = vunpack.c.l.b16 %v255
    %v452 = vunpack.c.l.b16 %v256
    %v453 = vunpack.c.l.b16 %v257
    %v454 = vunpack.c.l.b16 %v258
    %v455 = vunpack.c.l.b16 %v259
    %v456 = vunpack.c.l.b16 %v260
    %v457 = vunpack.c.l.b16 %v261
    %v458 = vunpack.c.l.b16 %v262
    %v459 = vunpack.c.l.b16 %v263
    %v460 = vunpack.c.l.b16 %v264
    %v461 = vunpack.c.l.b16 %v265
    %v462 = vunpack.c.l.b16 %v266
    %v463 = vunpack.c.l.b16 %v267
    %v464 = vunpack.c.l.b16 %v268
    %v465 = vunpack.c.l.b16 %v269
    %v466 = vunpack.c.l.b16 %v270
    %v467 = vunpack.c.l.b16 %v271
    %v468 = vunpack.c.l.b16 %v272
    %v469 = vunpack.c.l.b16 %v273
    %v470 = vunpack.c.l.b16 %v274
    %v471 = vunpack.c.l.b16 %v275
    %v472 = vunpack.c.l.b16 %v276
    %v473 = vunpack.c.l.b16 %v277
    %v474 = vunpack.c.l.b16 %v278
    %v475 = vunpack.c.l.b16 %v279
    %v476 = vpack.c.b16 %v381, %v380
    %v477 = vpack.c.b16 %v383, %v382
    %v478 = vpack.c.b16 %v385, %v384
    %v479 = vpack.c.b16 %v387, %v386
    %v480 = vpack.c.b16 %v389, %v388
    %v481 = vpack.c.b16 %v391, %v390
    %v482 = vpack.c.b16 %v393, %v392
    %v483 = vpack.c.b16 %v395, %v394
    %v484 = vpack.c.b16 %v397, %v396
    %v485 = vpack.c.b16 %v399, %v398
    %v486 = vpack.c.b16 %v401, %v400
    %v487 = vpack.c.b16 %v403, %v402
    %v488 = vpack.c.b16 %v405, %v404
    %v489 = vpack.c.b16 %v407, %v406
    %v490 = vpack.c.b16 %v409, %v408
    %v491 = vpack.c.b16 %v411, %v410
    %v492 = vpack.c.b16 %v413, %v412
    %v493 = vpack.c.b16 %v415, %v414
    %v494 = vpack.c.b16 %v417, %v416
    %v495 = vpack.c.b16 %v419, %v418
    %v496 = vpack.c.b16 %v421, %v420
    %v497 = vpack.c.b16 %v423, %v422
    %v498 = vpack.c.b16 %v425, %v424
    %v499 = vpack.c.b16 %v427, %v426
    %v500 = vpack.c.b16 %v429, %v428
    %v501 = vpack.c.b16 %v431, %v430
    %v502 = vpack.c.b16 %v433, %v432
    %v503 = vpack.c.b16 %v435, %v434
    %v504 = vpack.c.b16 %v437, %v436
    %v505 = vpack.c.b16 %v439, %v438
    %v506 = vpack.c.b16 %v441, %v440
    %v507 = vpack.c.b16 %v443, %v442
    %v508 = vpack.c.b16 %v445, %v444
    %v509 = vpack.c.b16 %v447, %v446
    %v510 = vpack.c.b16 %v449, %v448
    %v511 = vpack.c.b16 %v451, %v450
    %v512 = vpack.c.b16 %v453, %v452
    %v513 = vpack.c.b16 %v455, %v454
    %v514 = vpack.c.b16 %v457, %v456
    %v515 = vpack.c.b16 %v459, %v458
    %v516 = vpack.c.b16 %v461, %v460
    %v517 = vpack.c.b16 %v463, %v462
    %v518 = vpack.c.b16 %v465, %v464
    %v519 = vpack.c.b16 %v467, %v466
    %v520 = vpack.c.b16 %v469, %v468
    %v521 = vpack.c.b16 %v471, %v470
    %v522 = vpack.c.b16 %v473, %v472
    %v523 = vpack.c.b16 %v475, %v474
    %572 = vmatpush.bf16.msra.mxu0 %v483
    %573 = vmatpush.bf16.msra.mxu0 %v482
    %574 = vmatpush.bf16.msra.mxu0 %v481
    %575 = vmatpush.bf16.msra.mxu0 %v480
    %576 = vmatpush.bf16.msra.mxu0 %v479
    %577 = vmatpush.bf16.msra.mxu0 %v478
    %578 = vmatpush.bf16.msra.mxu0 %v477
    %579 = vmatpush.bf16.msra.mxu0 %v476
    %580 = vmatmul.bf16.gmra.mxu0 %v178
    %v581 = vpop.f32.mrf.mxu0
    %v582 = vadd.f32 %v282, %v581
    %v583 = vpop.f32.mrf.mxu0
    %584 = vdwg.mxu0
    %585 = vmatpush.bf16.msra.mxu0 %v491
    %586 = vmatpush.bf16.msra.mxu0 %v490
    %587 = vmatpush.bf16.msra.mxu0 %v489
    %588 = vmatpush.bf16.msra.mxu0 %v488
    %589 = vmatpush.bf16.msra.mxu0 %v487
    %590 = vmatpush.bf16.msra.mxu0 %v486
    %591 = vmatpush.bf16.msra.mxu0 %v485
    %592 = vmatpush.bf16.msra.mxu0 %v484
    %593 = vmatmul.bf16.gmra.mxu0 %v179
    %v594 = vpop.f32.mrf.mxu0
    %v595 = vadd.f32 %v582, %v594
    %v596 = vpop.f32.mrf.mxu0
    %597 = vdwg.mxu0
    %598 = vmatpush.bf16.msra.mxu0 %v499
    %599 = vmatpush.bf16.msra.mxu0 %v498
    %600 = vmatpush.bf16.msra.mxu0 %v497
    %601 = vmatpush.bf16.msra.mxu0 %v496
    %602 = vmatpush.bf16.msra.mxu0 %v495
    %603 = vmatpush.bf16.msra.mxu0 %v494
    %604 = vmatpush.bf16.msra.mxu0 %v493
    %605 = vmatpush.bf16.msra.mxu0 %v492
    %606 = vmatmul.bf16.gmra.mxu0 %v180
    %v607 = vpop.f32.mrf.mxu0
    %v608 = vadd.f32 %v595, %v607
    %v609 = vpop.f32.mrf.mxu0
    %610 = vdwg.mxu0
    %611 = vmatpush.bf16.msra.mxu0 %v507
    %612 = vmatpush.bf16.msra.mxu0 %v506
    %613 = vmatpush.bf16.msra.mxu0 %v505
    %614 = vmatpush.bf16.msra.mxu0 %v504
    %615 = vmatpush.bf16.msra.mxu0 %v503
    %616 = vmatpush.bf16.msra.mxu0 %v502
    %617 = vmatpush.bf16.msra.mxu0 %v501
    %618 = vmatpush.bf16.msra.mxu0 %v500
    %619 = vmatmul.bf16.gmra.mxu0 %v181
    %v620 = vpop.f32.mrf.mxu0
    %v621 = vadd.f32 %v608, %v620
    %v622 = vpop.f32.mrf.mxu0
    %623 = vdwg.mxu0
    %624 = vmatpush.bf16.msra.mxu0 %v515
    %625 = vmatpush.bf16.msra.mxu0 %v514
    %626 = vmatpush.bf16.msra.mxu0 %v513
    %627 = vmatpush.bf16.msra.mxu0 %v512
    %628 = vmatpush.bf16.msra.mxu0 %v511
    %629 = vmatpush.bf16.msra.mxu0 %v510
    %630 = vmatpush.bf16.msra.mxu0 %v509
    %631 = vmatpush.bf16.msra.mxu0 %v508
    %632 = vmatmul.bf16.gmra.mxu0 %v182
    %v633 = vpop.f32.mrf.mxu0
    %v634 = vadd.f32 %v621, %v633
    %v635 = vpop.f32.mrf.mxu0
    %636 = vdwg.mxu0
    %637 = vmatpush.bf16.msra.mxu0 %v523
    %638 = vmatpush.bf16.msra.mxu0 %v522
    %639 = vmatpush.bf16.msra.mxu0 %v521
    %640 = vmatpush.bf16.msra.mxu0 %v520
    %641 = vmatpush.bf16.msra.mxu0 %v519
    %642 = vmatpush.bf16.msra.mxu0 %v518
    %643 = vmatpush.bf16.msra.mxu0 %v517
    %644 = vmatpush.bf16.msra.mxu0 %v516
    %645 = vmatmul.bf16.gmra.mxu0 %v183
    %v646 = vpop.f32.mrf.mxu0
    %v647 = vadd.f32 %v634, %v646
    %v648 = vpop.f32.mrf.mxu0
    %649 = vdwg.mxu0
    %v650 = vpack.c.bf16 %v647, %v647
    %651 = vst [vmem:[%s5] sm:$0xf] %v650
    // Predicated region
    $region38: #{forward.1} parent=1 // pred_check
      _
    $region39: #{forward.1} parent=1 // pred_check_branch
      %653 = sbr.rel (0) target = $region41
    $region40: #{forward.1} parent=1 // pred_region
      _
    $region41: #{forward.1} parent=1 // pred_fallthru
      _
    // Predicated region
    $region42: #{forward.1} parent=1 // pred_check
      _
    $region43: #{forward.1} parent=1 // pred_check_branch
      %655 = sbr.rel (0) target = $region45
    $region44: #{forward.1} parent=1 // pred_region
      _
    $region45: #{forward.1} parent=1 // pred_fallthru
      _
    %656 = vsyncpa [#allocation3], 1
    %657 = vsyncpa [#allocation5], 1
    %658 = vsyncpa [#allocation8], 1

</llo_original>
